<compile_context>
chip_gen: v5e
topology: v5e:2x2
jax: 0.10.0
libtpu: 0.0.40
codegen_flags: <defaults>
</compile_context>

<pallas_src>
import functools

import jax
import jax.numpy as jnp
from jax.experimental import pallas as pl
from jax.experimental.pallas import tpu as pltpu


# ---------------------------------------------------------------------------
# Kernels
# ---------------------------------------------------------------------------

def _graphnorm_kernel(x_ref, gamma_ref, beta_ref, o_ref, *, eps, n_total,
                      fold_k, feat):
    """Fused GraphNorm for a (BB, N_rows, L) slab holding whole graphs.

    x_ref : (BB, N_rows, L) with L = fold_k * feat.  When fold_k > 1 the
            element (b, r, k*feat + f) is node r*fold_k + k, feature f of
            graph b (lane-folded layout).
    gamma_ref / beta_ref : (1, L), already tiled to the folded lane layout.
    """
    inv_n = 1.0 / float(n_total)

    def fold(v):
        # v: (BB, 1, L) per-lane partial sums.  Sum over the fold_k lane
        # groups (stride `feat`) and broadcast the total back to every group
        # using log2(fold_k) roll+add steps (XLU slot; tiny array, ~free).
        if fold_k == 1:
            return v
        shift = feat
        while shift < fold_k * feat:
            v = v + pltpu.roll(v, shift, axis=2)
            shift *= 2
        return v

    gamma = gamma_ref[...].astype(jnp.float32)[:, None, :]   # (1, 1, L)
    beta = beta_ref[...].astype(jnp.float32)[:, None, :]     # (1, 1, L)

    # Pass 1: per-feature mean (fp32 accumulation; sublane reduce + lane fold).
    mean = fold(jnp.sum(x_ref[...].astype(jnp.float32),
                        axis=1, keepdims=True)) * inv_n       # (BB, 1, L)

    # Pass 2 (re-read x): centered sum of squares -> biased variance.
    var = fold(jnp.sum(jnp.square(x_ref[...].astype(jnp.float32) - mean),
                       axis=1, keepdims=True)) * inv_n        # (BB, 1, L)

    scale = gamma * jax.lax.rsqrt(var + eps)                  # (BB, 1, L)

    # Pass 3 (re-read x): normalize + affine, centered form for precision.
    o_ref[...] = ((x_ref[...].astype(jnp.float32) - mean) * scale
                  + beta).astype(o_ref.dtype)


def _stats_kernel(x_ref, sum_ref, sq_ref):
    """Accumulate per-(graph, feature) sum and sum-of-squares over N tiles."""
    xf = x_ref[...].astype(jnp.float32)                    # (1, TN, TF)
    ps = jnp.sum(xf, axis=1, keepdims=True)                 # (1, 1, TF)
    pq = jnp.sum(xf * xf, axis=1, keepdims=True)

    @pl.when(pl.program_id(2) == 0)
    def _init():
        sum_ref[...] = ps
        sq_ref[...] = pq

    @pl.when(pl.program_id(2) != 0)
    def _acc():
        sum_ref[...] = sum_ref[...] + ps
        sq_ref[...] = sq_ref[...] + pq


def _apply_kernel(x_ref, mean_ref, scale_ref, beta_ref, o_ref):
    """Elementwise (x - mean) * scale + beta for one (1, TN, TF) tile."""
    o_ref[...] = ((x_ref[...].astype(jnp.float32) - mean_ref[...])
                  * scale_ref[...] + beta_ref[...]).astype(o_ref.dtype)


# ---------------------------------------------------------------------------
# Tiling helpers
# ---------------------------------------------------------------------------

def _divisors_desc(n):
    small, large = [], []
    d = 1
    while d * d <= n:
        if n % d == 0:
            small.append(d)
            if d * d != n:
                large.append(n // d)
        d += 1
    return large + small[::-1]


def _largest_divisor(n, pred):
    for d in _divisors_desc(n):
        if pred(d):
            return d
    return None


def _vmem_budget(dtype_bytes, max_block_bytes):
    """(vmem_limit_bytes, per-block slab budget in input-dtype bytes)."""
    try:
        cap = int(pltpu.get_tpu_info().vmem_capacity_bytes)
    except Exception:   # query unavailable: assume the tightest chip (v7x TC)
        cap = 64 << 20
    vmem_limit = int(min(max(cap // 2, 16 << 20), 96 << 20))
    # Per-block accounting: double-buffered in + out (4x slab in input dtype)
    # plus ~2 fp32-sized in-kernel temporaries, with some headroom.
    divisor = 6 + (8 // max(dtype_bytes, 1))
    slab = max(1 << 20, min(vmem_limit // divisor, 16 << 20))
    if max_block_bytes is not None:
        slab = min(slab, int(max_block_bytes))
    return vmem_limit, slab


def _pick_lane_fold(n_nodes, feat, max_lanes=1024):
    """Largest power-of-two divisor of N with fold*feat a multiple of 128 and
    <= max_lanes (lane-dense folded layout for small F)."""
    best, fold = 1, 1
    while n_nodes % (fold * 2) == 0 and (fold * 2) * feat <= max_lanes:
        fold *= 2
        if (fold * feat) % 128 == 0:
            best = fold
    return best


# ---------------------------------------------------------------------------
# Dispatch paths
# ---------------------------------------------------------------------------

def _graph_norm_whole_graph(x, gamma_l, beta_l, eps, n_total, fold_k, feat,
                            tf, slab, vmem_limit):
    """Path A: whole graph(s) per block, fused single kernel."""
    B, N2, L = x.shape
    isz = jnp.dtype(x.dtype).itemsize

    # Fold several whole graphs into one block (amortizes ~0.35us/step).
    block_bytes = N2 * tf * isz
    bb = _largest_divisor(B, lambda d: d * block_bytes <= slab) or 1

    num_f, num_b = L // tf, B // bb
    # Guarantee >=2 grid steps on a "parallel" axis when possible so both
    # TensorCores stream HBM on v7x (no effect on single-TC chips).
    if num_f * num_b == 1:
        if fold_k == 1 and tf % 256 == 0:
            tf //= 2
            num_f = 2
        elif B > 1:
            bb = _largest_divisor(B, lambda d: d < B) or 1
            num_b = B // bb
        # else: single small / single-graph block.
        # TODO(synk): split N across cores for the one-big-graph, small-F case.

    gamma2 = gamma_l.reshape(1, L)
    beta2 = beta_l.reshape(1, L)

    kernel = functools.partial(_graphnorm_kernel, eps=eps, n_total=n_total,
                               fold_k=fold_k, feat=feat)
    return pl.pallas_call(
        kernel,
        out_shape=jax.ShapeDtypeStruct((B, N2, L), x.dtype),
        # Feature axis outermost: gamma/beta tiles keep the same block index on
        # consecutive steps and are not re-DMA'd.
        grid=(num_f, num_b),
        in_specs=[
            pl.BlockSpec((bb, N2, tf), lambda f, b: (b, 0, f)),
            pl.BlockSpec((1, tf), lambda f, b: (0, f)),
            pl.BlockSpec((1, tf), lambda f, b: (0, f)),
        ],
        out_specs=pl.BlockSpec((bb, N2, tf), lambda f, b: (b, 0, f)),
        compiler_params=pltpu.CompilerParams(
            dimension_semantics=("parallel", "parallel"),
            vmem_limit_bytes=vmem_limit,
        ),
    )(x, gamma2, beta2)


def _graph_norm_tiled_nodes(x, gamma_l, beta_l, eps, slab, vmem_limit):
    """Path B (large N): stats kernel with an 'arbitrary' N axis + apply kernel."""
    B, N, F = x.shape
    isz = jnp.dtype(x.dtype).itemsize

    if F % 128 == 0:
        tf = _largest_divisor(F, lambda d: d % 128 == 0 and 8 * d * isz <= slab)
    else:
        tf = F if 8 * F * isz <= slab else None
    tn = None
    if tf is not None:
        tn = _largest_divisor(N, lambda d: d % 8 == 0 and d * tf * isz <= slab)
    if tf is None or tn is None:
        # TODO(synk): pad/mask N when it has no suitable multiple-of-8 divisor;
        # fall back to one (possibly oversized) whole-graph block.
        return _graph_norm_whole_graph(x, gamma_l, beta_l, eps, N, 1, F, F,
                                       slab, vmem_limit)

    num_f, num_n = F // tf, N // tn

    sums, sqs = pl.pallas_call(
        _stats_kernel,
        out_shape=(jax.ShapeDtypeStruct((B, 1, F), jnp.float32),
                   jax.ShapeDtypeStruct((B, 1, F), jnp.float32)),
        # N axis last ("arbitrary"): fp32 accumulators stay VMEM-resident.
        grid=(B, num_f, num_n),
        in_specs=[pl.BlockSpec((1, tn, tf), lambda b, f, n: (b, n, f))],
        out_specs=(pl.BlockSpec((1, 1, tf), lambda b, f, n: (b, 0, f)),
                   pl.BlockSpec((1, 1, tf), lambda b, f, n: (b, 0, f))),
        compiler_params=pltpu.CompilerParams(
            dimension_semantics=("parallel", "parallel", "arbitrary"),
            vmem_limit_bytes=vmem_limit,
        ),
    )(x)

    # Tiny (B, 1, F) glue in plain XLA: finish the moments, fold in gamma.
    # One-pass E[x^2] - mean^2 (fp32-accumulated); clamp guards cancellation.
    inv_n = 1.0 / float(N)
    mean = sums * inv_n
    var = jnp.maximum(sqs * inv_n - mean * mean, 0.0)
    scale = gamma_l.reshape(1, 1, F).astype(jnp.float32) * jax.lax.rsqrt(var + eps)
    beta3 = jnp.broadcast_to(beta_l.reshape(1, 1, F).astype(jnp.float32), (1, 1, F))

    return pl.pallas_call(
        _apply_kernel,
        out_shape=jax.ShapeDtypeStruct((B, N, F), x.dtype),
        # f outermost (beta tile reused); n innermost (mean/scale tiles reused).
        grid=(num_f, B, num_n),
        in_specs=[
            pl.BlockSpec((1, tn, tf), lambda f, b, n: (b, n, f)),
            pl.BlockSpec((1, 1, tf), lambda f, b, n: (b, 0, f)),
            pl.BlockSpec((1, 1, tf), lambda f, b, n: (b, 0, f)),
            pl.BlockSpec((1, 1, tf), lambda f, b, n: (0, 0, f)),
        ],
        out_specs=pl.BlockSpec((1, tn, tf), lambda f, b, n: (b, n, f)),
        compiler_params=pltpu.CompilerParams(
            dimension_semantics=("parallel", "parallel", "parallel"),
            vmem_limit_bytes=vmem_limit,
        ),
    )(x, mean, scale, beta3)


# ---------------------------------------------------------------------------
# Public entry point
# ---------------------------------------------------------------------------

def graph_norm(x, gamma, beta, alpha=None, eps=1e-5, *, max_block_bytes=None):
    """GraphNorm forward matching the PyTorch module exactly.

    `alpha` is accepted for API parity but is algebraically dead in this
    module's forward: mean*alpha is constant along the node axis and
    torch.var re-centers its argument, so var(x - mean*alpha) == var(x);
    the numerator uses (x - mean).  It is therefore never read.
    """
    del alpha
    B, N, F = x.shape
    isz = jnp.dtype(x.dtype).itemsize
    vmem_limit, slab = _vmem_budget(isz, max_block_bytes)

    # Lane-dense small-F path: fold nodes into lanes (pure, free reshape).
    fold_k = 1
    if F < 128 and N * F * isz <= slab:
        fold_k = _pick_lane_fold(N, F)
    if fold_k > 1:
        x2 = x.reshape(B, N // fold_k, fold_k * F)
        gamma_l = jnp.tile(gamma.reshape(-1), fold_k)
        beta_l = jnp.tile(beta.reshape(-1), fold_k)
    else:
        x2 = x
        gamma_l = gamma.reshape(-1)
        beta_l = beta.reshape(-1)
    _, N2, L = x2.shape

    # Whole-graph (Path A) feature tile, if one (1, N2, tf) slab fits.
    if fold_k > 1:
        tf_a = L  # the folded lane groups cannot be split across tiles
    elif L % 128 == 0:
        tf_a = _largest_divisor(
            L, lambda d: d % 128 == 0 and N2 * d * isz <= slab)
    else:
        tf_a = L if N2 * L * isz <= slab else None
        # TODO(synk): for 128 < F not a multiple of 128, pad F for full lane
        # density instead of using a ragged last tile.

    if tf_a is not None:
        out = _graph_norm_whole_graph(x2, gamma_l, beta_l, eps, N, fold_k, F,
                                      tf_a, slab, vmem_limit)
    else:
        out = _graph_norm_tiled_nodes(x2, gamma_l, beta_l, eps, slab,
                                      vmem_limit)
    return out.reshape(B, N, F)


# ---------------------------------------------------------------------------
# Reference + tests
# ---------------------------------------------------------------------------

def _graph_norm_ref(x, gamma, beta, alpha, eps=1e-5):
    # Pure-JAX reference mirroring the PyTorch forward literally.
    x = x.astype(jnp.float32)
    mean = jnp.mean(x, axis=1, keepdims=True)
    scaled_x = x - mean * alpha.reshape(1, 1, -1).astype(jnp.float32)
    var = jnp.var(scaled_x, axis=1, keepdims=True)  # ddof=0 == unbiased=False
    x_normalized = (x - mean) / jnp.sqrt(var + eps)
    return (gamma.reshape(1, 1, -1).astype(jnp.float32) * x_normalized
            + beta.reshape(1, 1, -1).astype(jnp.float32))


if __name__ == "__main__":
    def _check(B, N, F, *, random_params, atol, rtol, dtype=jnp.float32,
               max_block_bytes=None):
        key = jax.random.PRNGKey(0)
        kx, kg, kb, ka = jax.random.split(key, 4)
        x = jax.random.normal(kx, (B, N, F), dtype=jnp.float32).astype(dtype)
        if random_params:
            gamma = jax.random.normal(kg, (F,), dtype=jnp.float32)
            beta = jax.random.normal(kb, (F,), dtype=jnp.float32)
            alpha = jax.random.normal(ka, (F,), dtype=jnp.float32)
        else:
            # nn.Parameter(ones / zeros / ones) init from the module.
            gamma = jnp.ones((F,), dtype=jnp.float32)
            beta = jnp.zeros((F,), dtype=jnp.float32)
            alpha = jnp.ones((F,), dtype=jnp.float32)

        out = jax.block_until_ready(
            graph_norm(x, gamma, beta, alpha, max_block_bytes=max_block_bytes))
        ref = _graph_norm_ref(x.astype(jnp.float32), gamma, beta, alpha)
        assert out.shape == (B, N, F)
        assert jnp.allclose(out.astype(jnp.float32), ref, atol=atol,
                            rtol=rtol), (B, N, F, str(dtype))

    # Small module-implied shape (batch, nodes, feature_num); exercises the
    # lane-dense fold path (fold_k=8 -> 256 lanes).
    _check(2, 8, 32, random_params=False, atol=1e-5, rtol=1e-5)
    # Non-trivial gamma/beta/alpha; whole-graph path with feature tiling.
    _check(1, 2048, 1024, random_params=True, atol=1e-4, rtol=1e-4)
    # Force the large-N two-kernel path with a tiny per-block budget.
    _check(2, 64, 256, random_params=True, atol=1e-4, rtol=1e-4,
           max_block_bytes=16 * 1024)
    # bf16 input (fp32 accumulation inside the kernel).
    _check(2, 128, 256, random_params=True, atol=5e-2, rtol=5e-2,
           dtype=jnp.bfloat16)

    print("KERNEL_OK")
</pallas_src>

<mosaic_0001>
module attributes {stable_mosaic.version = 11 : i64} {
  func.func @_graphnorm_kernel(%arg0: i32, %arg1: i32, %arg2: memref<1x1x256xf32, #tpu.memory_space<vmem>>, %arg3: memref<1x256xf32, #tpu.memory_space<vmem>>, %arg4: memref<1x256xf32, #tpu.memory_space<vmem>>, %arg5: memref<1x1x256xf32, #tpu.memory_space<vmem>>) attributes {dimension_semantics = [#tpu.dimension_semantics<parallel>, #tpu.dimension_semantics<parallel>], iteration_bounds = array<i64: 1, 2>, scalar_prefetch = 0 : i64, scratch_operands = 0 : i64, tpu.core_type = #tpu.core_type<tc>, window_params = [{transform_indices = @transform_0, window_bounds = array<i64: 1, 1, 256>}, {transform_indices = @transform_1, window_bounds = array<i64: 1, 256>}, {transform_indices = @transform_2, window_bounds = array<i64: 1, 256>}, {transform_indices = @transform_3, window_bounds = array<i64: 1, 1, 256>}]} {
    %c0 = arith.constant 0 : index
    %c0_0 = arith.constant 0 : index
    %0 = vector.load %arg3[%c0, %c0_0] : memref<1x256xf32, #tpu.memory_space<vmem>>, vector<1x256xf32>
    %1 = vector.shape_cast %0 : vector<1x256xf32> to vector<1x1x256xf32>
    %c0_1 = arith.constant 0 : index
    %c0_2 = arith.constant 0 : index
    %2 = vector.load %arg4[%c0_1, %c0_2] : memref<1x256xf32, #tpu.memory_space<vmem>>, vector<1x256xf32>
    %3 = vector.shape_cast %2 : vector<1x256xf32> to vector<1x1x256xf32>
    %c0_3 = arith.constant 0 : index
    %c0_4 = arith.constant 0 : index
    %c0_5 = arith.constant 0 : index
    %4 = vector.load %arg2[%c0_3, %c0_4, %c0_5] : memref<1x1x256xf32, #tpu.memory_space<vmem>>, vector<1x1x256xf32>
    %cst = arith.constant dense<0.000000e+00> : vector<1x256xf32>
    %5 = vector.multi_reduction <add>, %4, %cst [1] : vector<1x1x256xf32> to vector<1x256xf32>
    %6 = vector.shape_cast %5 : vector<1x256xf32> to vector<1x1x256xf32>
    %c32_i32 = arith.constant 32 : i32
    %7 = tpu.dynamic_rotate %6 by %c32_i32 dim 2 : vector<1x1x256xf32>, i32 -> vector<1x1x256xf32>
    %8 = arith.addf %6, %7 : vector<1x1x256xf32>
    %c64_i32 = arith.constant 64 : i32
    %9 = tpu.dynamic_rotate %8 by %c64_i32 dim 2 : vector<1x1x256xf32>, i32 -> vector<1x1x256xf32>
    %10 = arith.addf %8, %9 : vector<1x1x256xf32>
    %c128_i32 = arith.constant 128 : i32
    %11 = tpu.dynamic_rotate %10 by %c128_i32 dim 2 : vector<1x1x256xf32>, i32 -> vector<1x1x256xf32>
    %12 = arith.addf %10, %11 : vector<1x1x256xf32>
    %cst_6 = arith.constant 1.250000e-01 : f32
    %13 = vector.broadcast %cst_6 : f32 to vector<1x1x256xf32>
    %14 = arith.mulf %12, %13 : vector<1x1x256xf32>
    %c0_7 = arith.constant 0 : index
    %c0_8 = arith.constant 0 : index
    %c0_9 = arith.constant 0 : index
    %15 = vector.load %arg2[%c0_7, %c0_8, %c0_9] : memref<1x1x256xf32, #tpu.memory_space<vmem>>, vector<1x1x256xf32>
    %16 = arith.subf %15, %14 : vector<1x1x256xf32>
    %17 = arith.mulf %16, %16 : vector<1x1x256xf32>
    %cst_10 = arith.constant dense<0.000000e+00> : vector<1x256xf32>
    %18 = vector.multi_reduction <add>, %17, %cst_10 [1] : vector<1x1x256xf32> to vector<1x256xf32>
    %19 = vector.shape_cast %18 : vector<1x256xf32> to vector<1x1x256xf32>
    %c32_i32_11 = arith.constant 32 : i32
    %20 = tpu.dynamic_rotate %19 by %c32_i32_11 dim 2 : vector<1x1x256xf32>, i32 -> vector<1x1x256xf32>
    %21 = arith.addf %19, %20 : vector<1x1x256xf32>
    %c64_i32_12 = arith.constant 64 : i32
    %22 = tpu.dynamic_rotate %21 by %c64_i32_12 dim 2 : vector<1x1x256xf32>, i32 -> vector<1x1x256xf32>
    %23 = arith.addf %21, %22 : vector<1x1x256xf32>
    %c128_i32_13 = arith.constant 128 : i32
    %24 = tpu.dynamic_rotate %23 by %c128_i32_13 dim 2 : vector<1x1x256xf32>, i32 -> vector<1x1x256xf32>
    %25 = arith.addf %23, %24 : vector<1x1x256xf32>
    %cst_14 = arith.constant 1.250000e-01 : f32
    %26 = vector.broadcast %cst_14 : f32 to vector<1x1x256xf32>
    %27 = arith.mulf %25, %26 : vector<1x1x256xf32>
    %cst_15 = arith.constant 9.99999974E-6 : f32
    %28 = vector.broadcast %cst_15 : f32 to vector<1x1x256xf32>
    %29 = arith.addf %27, %28 : vector<1x1x256xf32>
    %30 = math.rsqrt %29 : vector<1x1x256xf32>
    %31 = arith.mulf %1, %30 : vector<1x1x256xf32>
    %c0_16 = arith.constant 0 : index
    %c0_17 = arith.constant 0 : index
    %c0_18 = arith.constant 0 : index
    %32 = vector.load %arg2[%c0_16, %c0_17, %c0_18] : memref<1x1x256xf32, #tpu.memory_space<vmem>>, vector<1x1x256xf32>
    %33 = arith.subf %32, %14 : vector<1x1x256xf32>
    %34 = arith.mulf %33, %31 : vector<1x1x256xf32>
    %35 = arith.addf %34, %3 : vector<1x1x256xf32>
    %c0_19 = arith.constant 0 : index
    %c0_20 = arith.constant 0 : index
    %c0_21 = arith.constant 0 : index
    %36 = vector.load %arg5[%c0_19, %c0_20, %c0_21] : memref<1x1x256xf32, #tpu.memory_space<vmem>>, vector<1x1x256xf32>
    tpu.vector_store %arg5[%c0_19, %c0_20, %c0_21], %35 {strides = array<i32>} : memref<1x1x256xf32, #tpu.memory_space<vmem>>, vector<1x1x256xf32>,
    return
  }
  func.func @transform_0(%arg0: i32, %arg1: i32) -> (i32, i32, i32) {
    %c0_i32 = arith.constant 0 : i32
    %c0_i32_0 = arith.constant 0 : i32
    return %arg1, %c0_i32, %arg0 : i32, i32, i32
  }
  func.func @transform_1(%arg0: i32, %arg1: i32) -> (i32, i32) {
    %c0_i32 = arith.constant 0 : i32
    %c0_i32_0 = arith.constant 0 : i32
    return %c0_i32, %arg0 : i32, i32
  }
  func.func @transform_2(%arg0: i32, %arg1: i32) -> (i32, i32) {
    %c0_i32 = arith.constant 0 : i32
    %c0_i32_0 = arith.constant 0 : i32
    return %c0_i32, %arg0 : i32, i32
  }
  func.func @transform_3(%arg0: i32, %arg1: i32) -> (i32, i32, i32) {
    %c0_i32 = arith.constant 0 : i32
    %c0_i32_0 = arith.constant 0 : i32
    return %arg1, %c0_i32, %arg0 : i32, i32, i32
  }
}

</mosaic_0001>

<llo_original>
// kernel: tpu_custom_call.1
$region0: #{tpu_custom_call.1}
  #allocation0 [shape = 'u32[]', space=smem, size = 0x4, offset = 0x4, fixed_abs, tag = 'smem constant byte address 0x4 - core index']
  #allocation1 [shape = 'u32[72,128]{1,0:T(1,128)}', space=vmem, size = 0x9000, scoped, tag = 'internal scratch']
  %s0 = inlined_call_operand.hbm [shape: f32[2,1,256], index: 0, kind: input, shape index: {}]
  %s1 = inlined_call_operand.hbm [shape: f32[1,256], index: 1, kind: input, shape index: {}]
  %s2 = inlined_call_operand.hbm [shape: f32[1,256], index: 2, kind: input, shape index: {}]
  %s3 = inlined_call_operand.hbm [shape: f32[2,1,256], index: 3, kind: output, shape index: {}]
  %s4 = sld [smem:[#allocation0]]
  $region57: #{tpu_custom_call.1} parent=0
    _
  %s6 = ssub.s32 1, %s4
  %s7 = scalar_select 0, %s6, %s4
  $region1: #{tpu_custom_call.1} parent=0
    #allocation2 [shape = 'u8[2048]{0}', space=vmem, size = 0x800, scoped, tag = 'input window, operand 0']
    #allocation3 [shape = 's32[2]{0}', space=sflag, size = 0x8, scoped, tag = 'scoped memory for tpu_custom_call.1']
    #allocation4 [shape = 's32[2]{0}', space=sflag, size = 0x8, scoped, tag = 'scoped memory for tpu_custom_call.1']
    #allocation5 [shape = 'u8[1024]{0}', space=vmem, size = 0x400, scoped, tag = 'input window, operand 1, single buffered']
    #allocation6 [shape = 's32[1]{0}', space=sflag, size = 0x4, scoped, tag = 'scoped memory for tpu_custom_call.1']
    #allocation7 [shape = 'u8[1024]{0}', space=vmem, size = 0x400, scoped, tag = 'input window, operand 2, single buffered']
    #allocation8 [shape = 'u8[2048]{0}', space=vmem, size = 0x800, scoped, tag = 'output window, operand 0']
    %8 = vsyncpa [#allocation3], 0
    %s9 = scalar_lea.sflag [#allocation3], 1
    %10 = vsyncpa %s9, 0
    %11 = vsyncpa [#allocation6], 0
    %12 = vsyncpa [#allocation4], 0
    %s13 = scalar_lea.sflag [#allocation4], 1
    %14 = vsyncpa %s13, 0
    loop: start=0, step=1, limit=4
    $region2: #{tpu_custom_call.1} parent=1 // loop_pre_header
      _
    $region3: #{tpu_custom_call.1} parent=1 // loop_header
      %s16 = sphi 0, %s20
      %p17 = scmp.ge.s32.totalorder %s16, 4
      %s23 = sphi 0, %s35
      %s24 = sphi 0, %s31
      %s25 = sphi 0, %s23
      %s26 = sphi 0, %s24
      %s27 = sphi 0, %s25
      %s28 = sphi 0, %s26
      %s40 = sphi 0, %s42
      %s43 = sphi 0, %s40
      %s44 = sphi 0, %s43
      %s60 = sphi 0, %s44
      %s66 = sphi 0, %s68
      %s69 = sphi 0, %s66
      %s70 = sphi 0, %s69
      %s86 = sphi 0, %s70
      %s92 = sphi 0, %s94
      %s95 = sphi 0, %s92
      %s96 = sphi 0, %s95
      %s112 = sphi 0, %s96
      %s120 = sphi 0, %s122
      %s123 = sphi 0, %s120
      %s124 = sphi 0, %s123
      %s140 = sphi 0, %s124
    $region4: #{tpu_custom_call.1} parent=1 // loop_header_branch
      %19 = sbr.rel (%p17) target = $region8
    $region5: #{tpu_custom_call.1} parent=1 // loop_body
      %s21 = ssub.s32 %s16, 1
      %s22 = ssub.s32 %s16, 2
      %s29 = sadd.s32 1, %s24
      %p30 = scmp.ge.s32.totalorder %s29, 2
      %s31 = scalar_select %p30, 0, %s29
      %s32 = sadd.s32 1, %s23
      %s33 = scalar_select %p30, %s32, %s23
      %p34 = scmp.ge.s32.totalorder %s33, 1
      %s35 = scalar_select %p34, 0, %s33
      %s36 = ssub.s32 %s24, %s31
      %s37 = ssub.s32 %s23, %s35
      %s38 = sor.u32 %s36, %s37
      %p39 = scmp.eq.s32.totalorder %s38, 0
      %s41 = sadd.s32 %s40, 1
      %s42 = scalar_select %p39, %s40, %s41
      %p45 = pneg %p39
      %p46 = scmp.eq.s32.totalorder %s16, 1
      %p47 = por %p45, %p46
      %p48 = scmp.ne.s32.totalorder %s40, %s43
      %p49 = scmp.eq.s32.totalorder %s16, 0
      %p50 = por %p48, %p49
      %p51 = scmp.ne.s32.totalorder %s40, %s43
      %p52 = scmp.eq.s32.totalorder %s21, 1
      %p53 = por %p51, %p52
      %p54 = scmp.ne.s32.totalorder %s43, %s44
      %p55 = scmp.eq.s32.totalorder %s21, 0
      %p56 = por %p54, %p55
      %p57 = scmp.ne.s32.totalorder %s43, %s44
      %p58 = scmp.eq.s32.totalorder %s22, 1
      %p59 = por %p57, %p58
      %p61 = scmp.ne.s32.totalorder %s44, %s60
      %p62 = scmp.eq.s32.totalorder %s22, 0
      %p63 = por %p61, %p62
      %s64 = ssub.s32 %s23, %s35
      %p65 = scmp.eq.s32.totalorder %s64, 0
      %s67 = sadd.s32 %s66, 1
      %s68 = scalar_select %p65, %s66, %s67
      %p71 = pneg %p65
      %p72 = scmp.eq.s32.totalorder %s16, 1
      %p73 = por %p71, %p72
      %p74 = scmp.ne.s32.totalorder %s66, %s69
      %p75 = scmp.eq.s32.totalorder %s16, 0
      %p76 = por %p74, %p75
      %p77 = scmp.ne.s32.totalorder %s66, %s69
      %p78 = scmp.eq.s32.totalorder %s21, 1
      %p79 = por %p77, %p78
      %p80 = scmp.ne.s32.totalorder %s69, %s70
      %p81 = scmp.eq.s32.totalorder %s21, 0
      %p82 = por %p80, %p81
      %p83 = scmp.ne.s32.totalorder %s69, %s70
      %p84 = scmp.eq.s32.totalorder %s22, 1
      %p85 = por %p83, %p84
      %p87 = scmp.ne.s32.totalorder %s70, %s86
      %p88 = scmp.eq.s32.totalorder %s22, 0
      %p89 = por %p87, %p88
      %s90 = ssub.s32 %s23, %s35
      %p91 = scmp.eq.s32.totalorder %s90, 0
      %s93 = sadd.s32 %s92, 1
      %s94 = scalar_select %p91, %s92, %s93
      %p97 = pneg %p91
      %p98 = scmp.eq.s32.totalorder %s16, 1
      %p99 = por %p97, %p98
      %p100 = scmp.ne.s32.totalorder %s92, %s95
      %p101 = scmp.eq.s32.totalorder %s16, 0
      %p102 = por %p100, %p101
      %p103 = scmp.ne.s32.totalorder %s92, %s95
      %p104 = scmp.eq.s32.totalorder %s21, 1
      %p105 = por %p103, %p104
      %p106 = scmp.ne.s32.totalorder %s95, %s96
      %p107 = scmp.eq.s32.totalorder %s21, 0
      %p108 = por %p106, %p107
      %p109 = scmp.ne.s32.totalorder %s95, %s96
      %p110 = scmp.eq.s32.totalorder %s22, 1
      %p111 = por %p109, %p110
      %p113 = scmp.ne.s32.totalorder %s96, %s112
      %p114 = scmp.eq.s32.totalorder %s22, 0
      %p115 = por %p113, %p114
      %s116 = ssub.s32 %s24, %s31
      %s117 = ssub.s32 %s23, %s35
      %s118 = sor.u32 %s116, %s117
      %p119 = scmp.eq.s32.totalorder %s118, 0
      %s121 = sadd.s32 %s120, 1
      %s122 = scalar_select %p119, %s120, %s121
      %p125 = pneg %p119
      %p126 = scmp.eq.s32.totalorder %s16, 1
      %p127 = por %p125, %p126
      %p128 = scmp.ne.s32.totalorder %s120, %s123
      %p129 = scmp.eq.s32.totalorder %s16, 0
      %p130 = por %p128, %p129
      %p131 = scmp.ne.s32.totalorder %s120, %s123
      %p132 = scmp.eq.s32.totalorder %s21, 1
      %p133 = por %p131, %p132
      %p134 = scmp.ne.s32.totalorder %s123, %s124
      %p135 = scmp.eq.s32.totalorder %s21, 0
      %p136 = por %p134, %p135
      %p137 = scmp.ne.s32.totalorder %s123, %s124
      %p138 = scmp.eq.s32.totalorder %s22, 1
      %p139 = por %p137, %p138
      %p141 = scmp.ne.s32.totalorder %s124, %s140
      %p142 = scmp.eq.s32.totalorder %s22, 0
      %p143 = por %p141, %p142
      %p144 = scmp.le.s32.totalorder 1, %s16
      %p145 = scmp.lt.s32.totalorder %s16, 3
      %p146 = pnand %p144, %p145
      %p147 = pneg %p146
      // Predicated region
      $region9: #{tpu_custom_call.1} parent=5 // pred_check
        _
      $region10: #{tpu_custom_call.1} parent=5 // pred_check_branch
        %149 = sbr.rel (%p146) target = $region12
      $region11: #{tpu_custom_call.1} parent=5 // pred_region
        %s150 = ssub.s32 %s16, 1
        // Predicated region
        $region13: #{tpu_custom_call.1} parent=11 // pred_check
          %p151 = pneg %p82
        $region14: #{tpu_custom_call.1} parent=11 // pred_check_branch
          %153 = sbr.rel (%p151) target = $region16
        $region15: #{tpu_custom_call.1} parent=11 // pred_region
          %s154 = smul.u32 2, %s25
          %156 = vsyncadd [#allocation6], 0
          %s157 = scalar_lea.hbm %s1, %s154
          %s159 = sshll.u32 %s157, 4
          %s160 = int_to_ptr.hbm [resolvable:$true] %s159
          %s161 = sshll.u32 [#allocation5], 4
          %s162 = int_to_ptr.vmem [resolvable:$true] %s161
          %164 = dma.hbm_to_vmem [thread:$0]  %s160, 32, %s162, [#allocation6]
        $region16: #{tpu_custom_call.1} parent=11 // pred_fallthru
          _
        // Predicated region
        $region17: #{tpu_custom_call.1} parent=11 // pred_check
          %p165 = pneg %p108
        $region18: #{tpu_custom_call.1} parent=11 // pred_check_branch
          %167 = sbr.rel (%p165) target = $region20
        $region19: #{tpu_custom_call.1} parent=11 // pred_region
          %s168 = smul.u32 2, %s25
          %170 = vsyncadd [#allocation6], 0
          %s171 = scalar_lea.hbm %s2, %s168
          %s173 = sshll.u32 %s171, 4
          %s174 = int_to_ptr.hbm [resolvable:$true] %s173
          %s175 = sshll.u32 [#allocation7], 4
          %s176 = int_to_ptr.vmem [resolvable:$true] %s175
          %178 = dma.hbm_to_vmem [thread:$0]  %s174, 32, %s176, [#allocation6]
        $region20: #{tpu_custom_call.1} parent=11 // pred_fallthru
          _
      $region12: #{tpu_custom_call.1} parent=5 // pred_fallthru
        _
      %p179 = scmp.lt.s32.totalorder %s16, 2
      // Predicated region
      $region21: #{tpu_custom_call.1} parent=5 // pred_check
        %p180 = pneg %p179
      $region22: #{tpu_custom_call.1} parent=5 // pred_check_branch
        %182 = sbr.rel (%p180) target = $region24
      $region23: #{tpu_custom_call.1} parent=5 // pred_region
        // Predicated region
        $region25: #{tpu_custom_call.1} parent=23 // pred_check
          %p183 = pneg %p50
        $region26: #{tpu_custom_call.1} parent=23 // pred_check_branch
          %185 = sbr.rel (%p183) target = $region28
        $region27: #{tpu_custom_call.1} parent=23 // pred_region
          %s186 = sand.u32 %s40, 1
          %s187 = scalar_lea.sflag [#allocation3], %s186
          %s188 = sand.u32 %s40, 1
          %s189 = smul.addr %s188, 2
          %s190 = scalar_lea.vmem [#allocation2], %s189
          %s191 = smul.u32 2, %s23
          %193 = vsyncadd %s187, 0
          %s194 = smul.addr %s24, 2
          %s195 = sadd.s32 %s191, %s194
          %s196 = scalar_lea.hbm %s0, %s195
          %s198 = sshll.u32 %s196, 4
          %s199 = int_to_ptr.hbm [resolvable:$true] %s198
          %s200 = sshll.u32 %s190, 4
          %s201 = int_to_ptr.vmem [resolvable:$true] %s200
          %203 = dma.hbm_to_vmem [thread:$0]  %s199, 32, %s201, %s187
        $region28: #{tpu_custom_call.1} parent=23 // pred_fallthru
          _
      $region24: #{tpu_custom_call.1} parent=5 // pred_fallthru
        _
      %p204 = scmp.le.s32.totalorder 1, %s16
      %p205 = scmp.lt.s32.totalorder %s16, 3
      %p206 = pnand %p204, %p205
      %p207 = pneg %p206
      // Predicated region
      $region29: #{tpu_custom_call.1} parent=5 // pred_check
        _
      $region30: #{tpu_custom_call.1} parent=5 // pred_check_branch
        %209 = sbr.rel (%p206) target = $region32
      $region31: #{tpu_custom_call.1} parent=5 // pred_region
        %s210 = ssub.s32 %s16, 1
        %s211 = sand.u32 %s43, 1
        %s212 = scalar_lea.sflag [#allocation3], %s211
        %s213 = sand.u32 %s43, 1
        %s214 = smul.addr %s213, 2
        %s215 = scalar_lea.vmem [#allocation2], %s214
        // Predicated region
        $region33: #{tpu_custom_call.1} parent=31 // pred_check
          %p216 = pneg %p56
        $region34: #{tpu_custom_call.1} parent=31 // pred_check_branch
          %218 = sbr.rel (%p216) target = $region36
        $region35: #{tpu_custom_call.1} parent=31 // pred_region
          %220 = dma.done %s212, 32
        $region36: #{tpu_custom_call.1} parent=31 // pred_fallthru
          _
        // Predicated region
        $region37: #{tpu_custom_call.1} parent=31 // pred_check
          %p221 = pneg %p82
        $region38: #{tpu_custom_call.1} parent=31 // pred_check_branch
          %223 = sbr.rel (%p221) target = $region40
        $region39: #{tpu_custom_call.1} parent=31 // pred_region
          %225 = dma.done [#allocation6], 32
        $region40: #{tpu_custom_call.1} parent=31 // pred_fallthru
          _
        // Predicated region
        $region41: #{tpu_custom_call.1} parent=31 // pred_check
          %p226 = pneg %p108
        $region42: #{tpu_custom_call.1} parent=31 // pred_check_branch
          %228 = sbr.rel (%p226) target = $region44
        $region43: #{tpu_custom_call.1} parent=31 // pred_region
          %230 = dma.done [#allocation6], 32
        $region44: #{tpu_custom_call.1} parent=31 // pred_fallthru
          _
        %s231 = sand.u32 %s43, 1
        %s232 = scalar_lea.sflag [#allocation3], %s231
        %s233 = sand.u32 %s43, 1
        %s234 = smul.addr %s233, 2
        %s235 = scalar_lea.vmem [#allocation2], %s234
        %p236 = pneg %p56
        %p237 = pneg %p53
        %p238 = pneg %p82
        %p239 = pneg %p79
        %p240 = pneg %p108
        %p241 = pneg %p105
        %p242 = pneg %p136
        %p243 = pneg %p133
        %s244 = sand.u32 %s123, 1
        %s245 = scalar_lea.sflag [#allocation4], %s244
        %s246 = sand.u32 %s123, 1
        %s247 = smul.addr %s246, 2
        %s248 = scalar_lea.vmem [#allocation8], %s247
        %s249 = smul.u32 2, %s25
        %s250 = smul.u32 2, %s25
        %s251 = smul.u32 2, %s25
        %s252 = smul.u32 2, %s25
        %v253 = vld [vmem:[#allocation5] sm:$0x3]
        %v254 = vld [vmem:[#allocation7] sm:$0x3]
        %v255 = vld [vmem:[%s215] sm:$0x3]
        %v256 = vadd.f32 %v255, 0.0
        %v258 = vperm.slane %v256, 0
        %v259 = vperm.slane %v256, 1
        %262 = vrot.lane.b32.xlu0 %v258, 32
        %v263 = vpop.permute.xlu0 %262
        %264 = vrot.lane.b32.xlu0 %v259, 32
        %v265 = vpop.permute.xlu0 %264
        %v266 = vlaneseq
        %v267 = vand.u32 %v266, 127
        %vm268 = vcmp.lt.s32.totalorder %v267, 32
        %v269 = vsel %vm268, %v263, %v265
        %v270 = vsel %vm268, %v265, %v263
        %v273 = vrot.slane %v269, 7
        %vm274 = vcmask 1040384
        %v275 = vsel %vm274, %v270, %v273
        %v277 = vadd.f32 %v256, %v275
        %v279 = vperm.slane %v277, 0
        %v280 = vperm.slane %v277, 1
        %283 = vrot.lane.b32.xlu0 %v279, 64
        %v284 = vpop.permute.xlu0 %283
        %285 = vrot.lane.b32.xlu0 %v280, 64
        %v286 = vpop.permute.xlu0 %285
        %vm287 = vcmp.lt.s32.totalorder %v267, 64
        %v288 = vsel %vm287, %v284, %v286
        %v289 = vsel %vm287, %v286, %v284
        %v292 = vrot.slane %v288, 7
        %v293 = vsel %vm274, %v289, %v292
        %v295 = vadd.f32 %v277, %v293
        %v297 = vperm.slane %v295, 0
        %v298 = vperm.slane %v295, 1
        %v299 = vrot.slane %v297, 7
        %v300 = vsel %vm274, %v298, %v299
        %v302 = vadd.f32 %v295, %v300
        %v303 = vmul.f32 %v302, 0.125
        %v304 = vsub.f32 %v255, %v303
        %v305 = vmul.f32 %v304, %v304
        %v306 = vadd.f32 %v305, 0.0
        %v308 = vperm.slane %v306, 0
        %v309 = vperm.slane %v306, 1
        %312 = vrot.lane.b32.xlu0 %v308, 32
        %v313 = vpop.permute.xlu0 %312
        %314 = vrot.lane.b32.xlu0 %v309, 32
        %v315 = vpop.permute.xlu0 %314
        %v316 = vsel %vm268, %v313, %v315
        %v317 = vsel %vm268, %v315, %v313
        %v320 = vrot.slane %v316, 7
        %v321 = vsel %vm274, %v317, %v320
        %v323 = vadd.f32 %v306, %v321
        %v325 = vperm.slane %v323, 0
        %v326 = vperm.slane %v323, 1
        %329 = vrot.lane.b32.xlu0 %v325, 64
        %v330 = vpop.permute.xlu0 %329
        %331 = vrot.lane.b32.xlu0 %v326, 64
        %v332 = vpop.permute.xlu0 %331
        %v333 = vsel %vm287, %v330, %v332
        %v334 = vsel %vm287, %v332, %v330
        %v337 = vrot.slane %v333, 7
        %v338 = vsel %vm274, %v334, %v337
        %v340 = vadd.f32 %v323, %v338
        %v342 = vperm.slane %v340, 0
        %v343 = vperm.slane %v340, 1
        %v344 = vrot.slane %v342, 7
        %v345 = vsel %vm274, %v343, %v344
        %v347 = vadd.f32 %v340, %v345
        %v348 = vmul.f32 %v347, 0.125
        %v349 = vadd.f32 %v348, 1e-05
        %v350 = vrsqrt.pop %v349
        %v351 = vmul.f32 %v350, %v349
        %v352 = vmul.f32 %v351, %v350
        %v353 = vmul.f32 0.5, %v352
        %v354 = vsub.f32 1.5, %v353
        %v355 = vmul.f32 %v350, %v354
        %vm356 = vweird.f32 %v349
        %vm357 = vweird.f32 %v350
        %vm358 = vmor %vm356, %vm357
        %v359 = vsel %vm358, %v350, %v355
        %v360 = vmul.f32 %v253, %v359
        %v361 = vmul.f32 %v304, %v360
        %v362 = vadd.f32 %v361, %v254
        %v363 = vlaneseq
        %vm364 = vcmp.ge.s32.totalorder %v363, 0
        %vm365 = vcmp.lt.s32.totalorder %v363, 256
        %vm366 = vmand %vm364, %vm365
        %367 = vst.msk [vmem:[%s248] sm:$0x3] %vm366, %v362
        %s368 = sand.u32 %s123, 1
        %s369 = scalar_lea.sflag [#allocation4], %s368
        %s370 = sand.u32 %s123, 1
        %s371 = smul.addr %s370, 2
        %s372 = scalar_lea.vmem [#allocation8], %s371
        // Predicated region
        $region45: #{tpu_custom_call.1} parent=31 // pred_check
          %p373 = pneg %p133
        $region46: #{tpu_custom_call.1} parent=31 // pred_check_branch
          %375 = sbr.rel (%p373) target = $region48
        $region47: #{tpu_custom_call.1} parent=31 // pred_region
          %s376 = smul.u32 2, %s25
          %378 = vsyncadd %s369, 0
          %s379 = smul.addr %s26, 2
          %s380 = sadd.s32 %s376, %s379
          %s381 = scalar_lea.hbm %s3, %s380
          %s383 = sshll.u32 %s372, 4
          %s384 = int_to_ptr.vmem [resolvable:$true] %s383
          %s385 = sshll.u32 %s381, 4
          %s386 = int_to_ptr.hbm [resolvable:$true] %s385
          %388 = dma.vmem_to_hbm [thread:$0]  %s384, 32, %s386, %s369
        $region48: #{tpu_custom_call.1} parent=31 // pred_fallthru
          _
      $region32: #{tpu_custom_call.1} parent=5 // pred_fallthru
        _
      %p389 = scmp.le.s32.totalorder 2, %s16
      // Predicated region
      $region49: #{tpu_custom_call.1} parent=5 // pred_check
        %p390 = pneg %p389
      $region50: #{tpu_custom_call.1} parent=5 // pred_check_branch
        %392 = sbr.rel (%p390) target = $region52
      $region51: #{tpu_custom_call.1} parent=5 // pred_region
        %s393 = ssub.s32 %s16, 2
        // Predicated region
        $region53: #{tpu_custom_call.1} parent=51 // pred_check
          %p394 = pneg %p139
        $region54: #{tpu_custom_call.1} parent=51 // pred_check_branch
          %396 = sbr.rel (%p394) target = $region56
        $region55: #{tpu_custom_call.1} parent=51 // pred_region
          %s397 = sand.u32 %s124, 1
          %s398 = scalar_lea.sflag [#allocation4], %s397
          %s399 = sand.u32 %s124, 1
          %s400 = smul.addr %s399, 2
          %s401 = scalar_lea.vmem [#allocation8], %s400
          %403 = dma.done %s398, 32
        $region56: #{tpu_custom_call.1} parent=51 // pred_fallthru
          _
      $region52: #{tpu_custom_call.1} parent=5 // pred_fallthru
        _
    $region6: #{tpu_custom_call.1} parent=1 // loop_footer
      %s20 = sadd.s32 1, %s16
    $region7: #{tpu_custom_call.1} parent=1 // loop_footer_branch
      %15 = sbr.rel target = $region3
    $region8: #{tpu_custom_call.1} parent=1 // loop_exit
      _
    %404 = vsyncpa [#allocation3], 1
    %s405 = scalar_lea.sflag [#allocation3], 1
    %406 = vsyncpa %s405, 1
    %407 = vsyncpa [#allocation6], 1
    %408 = vsyncpa [#allocation4], 1
    %s409 = scalar_lea.sflag [#allocation4], 1
    %410 = vsyncpa %s409, 1

</llo_original>
